<compile_context>
chip_gen: v7x
topology: tpu7x:2x2x1
jax: 0.10.0
libtpu: 0.0.40
codegen_flags: <defaults>
</compile_context>

<pallas_src>
import numpy as np
import jax
import jax.numpy as jnp
from jax.experimental import pallas as pl
from jax.experimental.pallas import tpu as pltpu


def _penc2d_kernel(w_ref, m_ref, o_ref, enc_ref):
    """One grid step: write one (1, tc, X*Y) lane-dense slab of the encoding.

    w_ref  : (tc, 2*(X+Y)) f32  hi/lo channel tables for this channel tile
    m_ref  : (2*(X+Y), XY) f32  constant one-hot expansion matrix (loaded once)
    o_ref  : (1, tc, XY)        output block (flattened spatial -> lane-dense stores)
    enc_ref: (tc, XY)           VMEM scratch slab, reused across the batch axis
    """
    # The encoding does not depend on the batch index: compute it once per
    # channel tile (inner grid axis b == 0) and just re-store it for b > 0.
    @pl.when(pl.program_id(1) == 0)
    def _():
        # slab[c, x*Y + y] = ex[c, x] + ey[c, y], expanded via a one-hot matmul on
        # the idle MXU -> no per-channel transcendentals, no gathers, no reshapes.
        slab = jnp.dot(w_ref[...], m_ref[...], preferred_element_type=jnp.float32)
        enc_ref[...] = slab.astype(enc_ref.dtype)   # single cast per tile

    o_ref[0] = enc_ref[...]


def _build_tables(C, X, Y):
    """ex:(C, X), ey:(C, Y) float32 such that out[c, x, y] = ex[c, x] + ey[c, y].

    Mirrors PositionalEncoding2D: internal channel count ch = ceil(C/4)*2;
    channels [0, ch) encode x (sin/cos interleaved), channels [ch, 2*ch) encode y,
    and the result is truncated to the first C channels (C <= 2*ch always).
    """
    ch = int(np.ceil(C / 4) * 2)
    inv_freq = 1.0 / (10000.0 ** (np.arange(0, ch, 2, dtype=np.float64) / ch))  # (ch//2,)
    c = np.arange(C)
    is_x = c < ch
    cc = np.where(is_x, c, c - ch)            # channel index within its own axis encoding
    freq = inv_freq[cc // 2]                  # (C,)
    use_cos = (cc % 2) == 1                   # even -> sin, odd -> cos (get_emb interleave)

    def emb(pos_len):
        s = np.arange(pos_len, dtype=np.float64)[None, :] * freq[:, None]   # (C, pos_len)
        return np.where(use_cos[:, None], np.cos(s), np.sin(s))

    ex = np.where(is_x[:, None], emb(X), 0.0).astype(np.float32)   # (C, X)
    ey = np.where(is_x[:, None], 0.0, emb(Y)).astype(np.float32)   # (C, Y)
    return ex, ey


def _pick_channel_tile(C, XY, itemsize):
    """Channel-tile size: output block is double-buffered, plus one scratch slab
    and one f32 matmul result; keep well under v7x's scoped VMEM budget."""
    budget = 6 * 1024 * 1024
    per_channel = XY * (3 * itemsize + 4)
    cap = max(1, budget // per_channel)
    if C <= cap:
        return C                        # whole channel dim per block (always legal)
    if C % 8 == 0 and cap >= 8:
        return min(C, (cap // 8) * 8)   # multiple of 8 keeps the block (8,128)-legal
    return C                            # rare: huge, non-multiple-of-8 C; still correct


def positional_encoding_permute_2d(tensor: jax.Array) -> jax.Array:
    """JAX/Pallas equivalent of PositionalEncodingPermute2D(C)(tensor) for NCHW input."""
    if tensor.ndim != 4:
        raise RuntimeError("The input tensor has to be 4d!")
    B, C, X, Y = tensor.shape
    XY = X * Y
    out_dtype = tensor.dtype

    # 1) Tiny per-axis tables: the only transcendental work, done once on the host.
    #    (NOTE: values are computed in f32/f64 then cast to the output dtype once;
    #     for bf16 outputs this may differ from torch-in-bf16 by the last ulp.)
    ex, ey = _build_tables(C, X, Y)

    # 2) Channel tiling bounds VMEM (v7x: 64 MiB physical / 32 MiB default scoped).
    tc = _pick_channel_tile(C, XY, jnp.dtype(out_dtype).itemsize)
    nc = pl.cdiv(C, tc)
    c_pad = nc * tc
    if c_pad != C:                      # pad tables so every input block is in-bounds
        ex = np.pad(ex, ((0, c_pad - C), (0, 0)))
        ey = np.pad(ey, ((0, c_pad - C), (0, 0)))

    # 3) Constant one-hot expansion matrix M so that ([ex|ey] @ M)[c, x*Y+y] = ex[c,x]+ey[c,y].
    # TODO(synk): for very large X*Y planes, add an X-row grid axis so M and the per-step
    # slab stay small (or switch to the plain 4-D layout once Y is already a multiple of 128).
    lane = np.arange(XY)
    R = (lane[None, :] // Y == np.arange(X)[:, None]).astype(np.float32)   # (X, XY)
    T = (lane[None, :] % Y == np.arange(Y)[:, None]).astype(np.float32)    # (Y, XY)
    M = np.concatenate([R, R, T, T], axis=0)                               # (2*(X+Y), XY)

    # Split the tables into bf16-exact hi/lo parts so the one-hot matmul stays accurate
    # even if the f32 MXU matmul is executed at default (bfloat16) operand precision.
    w32 = jnp.asarray(np.concatenate([ex, ey], axis=1))          # (c_pad, X+Y) f32
    w_hi = w32.astype(jnp.bfloat16).astype(jnp.float32)
    w_lo = w32 - w_hi
    W = jnp.concatenate([w_hi[:, :X], w_lo[:, :X], w_hi[:, X:], w_lo[:, X:]], axis=1)
    KW = 2 * (X + Y)                                             # W: (c_pad, KW)

    grid_spec = pltpu.PrefetchScalarGridSpec(
        num_scalar_prefetch=0,
        grid=(nc, B),     # channel tiles outer ("parallel" -> megacore), batch inner
        in_specs=[
            pl.BlockSpec((tc, KW), lambda ci, b: (ci, 0)),   # W rows for this c-tile
            pl.BlockSpec((KW, XY), lambda ci, b: (0, 0)),    # M: constant block, loaded once
        ],
        out_specs=pl.BlockSpec((1, tc, XY), lambda ci, b: (b, ci, 0)),
        scratch_shapes=[pltpu.VMEM((tc, XY), out_dtype)],
    )

    out_flat = pl.pallas_call(
        _penc2d_kernel,
        out_shape=jax.ShapeDtypeStruct((B, C, XY), out_dtype),
        grid_spec=grid_spec,
        compiler_params=pltpu.CompilerParams(
            dimension_semantics=("parallel", "arbitrary"),
            vmem_limit_bytes=32 * 1024 * 1024,
        ),
    )(W, jnp.asarray(M))

    # Free layout plumbing: only the trailing dim is split, so this reshape is a no-copy.
    return out_flat.reshape(B, C, X, Y)


def _reference_numpy(shape, dtype):
    """Pure-numpy port of the PyTorch forward, for the correctness check."""
    B, C, X, Y = shape
    ch = int(np.ceil(C / 4) * 2)
    inv_freq = 1.0 / (10000.0 ** (np.arange(0, ch, 2, dtype=np.float32) / ch))
    pos_x = np.arange(X, dtype=np.float32)
    pos_y = np.arange(Y, dtype=np.float32)
    sin_inp_x = np.einsum("i,j->ij", pos_x, inv_freq)
    sin_inp_y = np.einsum("i,j->ij", pos_y, inv_freq)

    def get_emb(s):
        e = np.stack((np.sin(s), np.cos(s)), axis=-1)
        return e.reshape(*s.shape[:-1], -1)

    emb_x = get_emb(sin_inp_x)[:, None, :]          # (X, 1, ch)
    emb_y = get_emb(sin_inp_y)                      # (Y, ch)
    emb = np.zeros((X, Y, 2 * ch), dtype=np.float32)
    emb[:, :, :ch] = emb_x
    emb[:, :, ch:2 * ch] = emb_y
    out = np.broadcast_to(emb[None, :, :, :C], (B, X, Y, C)).astype(dtype)
    return np.transpose(out, (0, 3, 1, 2))          # NHWC -> NCHW


if __name__ == "__main__":
    key = jax.random.PRNGKey(0)
    B, C, X, Y = 2, 4, 16, 16
    x = jax.random.normal(key, (B, C, X, Y), dtype=jnp.float32)

    out = jax.block_until_ready(positional_encoding_permute_2d(x))

    ref = _reference_numpy((B, C, X, Y), np.float32)
    np.testing.assert_allclose(np.asarray(out), ref, rtol=1e-5, atol=1e-5)

    print("KERNEL_OK")
</pallas_src>

<mosaic_0001>
module attributes {stable_mosaic.version = 11 : i64} {
  func.func @_penc2d_kernel(%arg0: i32, %arg1: i32, %arg2: memref<4x64xf32, #tpu.memory_space<vmem>>, %arg3: memref<64x256xf32, #tpu.memory_space<vmem>>, %arg4: memref<1x4x256xf32, #tpu.memory_space<vmem>>, %arg5: memref<4x256xf32, #tpu.memory_space<vmem>>) attributes {dimension_semantics = [#tpu.dimension_semantics<parallel>, #tpu.dimension_semantics<arbitrary>], iteration_bounds = array<i64: 1, 2>, scalar_prefetch = 0 : i64, scratch_operands = 1 : i64, tpu.core_type = #tpu.core_type<tc>, window_params = [{transform_indices = @transform_0, window_bounds = array<i64: 4, 64>}, {pipeline_mode = #tpu.pipeline_mode<synchronous>, transform_indices = @transform_1, window_bounds = array<i64: 64, 256>}, {transform_indices = @transform_2, window_bounds = array<i64: 1, 4, 256>}]} {
    %c0_i32 = arith.constant 0 : i32
    %0 = arith.cmpi eq, %arg1, %c0_i32 : i32
    %1 = arith.extui %0 : i1 to i32
    %c0_i32_0 = arith.constant 0 : i32
    %2 = arith.cmpi ne, %1, %c0_i32_0 : i32
    scf.if %2 {
      %c0_5 = arith.constant 0 : index
      %c0_6 = arith.constant 0 : index
      %7 = vector.load %arg2[%c0_5, %c0_6] : memref<4x64xf32, #tpu.memory_space<vmem>>, vector<4x64xf32>
      %c0_7 = arith.constant 0 : index
      %c0_8 = arith.constant 0 : index
      %8 = vector.load %arg3[%c0_7, %c0_8] : memref<64x256xf32, #tpu.memory_space<vmem>>, vector<64x256xf32>
      %cst = arith.constant dense<0.000000e+00> : vector<4x256xf32>
      %9 = tpu.matmul %7, %8, %cst {dimension_numbers = #tpu.dot_dimension_numbers<[1], [0], [0], [1], [0, 0, 1, 1], [], []>} : vector<4x64xf32>, vector<64x256xf32>, vector<4x256xf32> -> vector<4x256xf32>
      %c0_9 = arith.constant 0 : index
      %c0_10 = arith.constant 0 : index
      %10 = vector.load %arg5[%c0_9, %c0_10] : memref<4x256xf32, #tpu.memory_space<vmem>>, vector<4x256xf32>
      tpu.vector_store %arg5[%c0_9, %c0_10], %9 {strides = array<i32>} : memref<4x256xf32, #tpu.memory_space<vmem>>, vector<4x256xf32>,
    } else {
    }
    %c0 = arith.constant 0 : index
    %c0_1 = arith.constant 0 : index
    %3 = vector.load %arg5[%c0, %c0_1] : memref<4x256xf32, #tpu.memory_space<vmem>>, vector<4x256xf32>
    %c0_2 = arith.constant 0 : index
    %c0_3 = arith.constant 0 : index
    %c0_4 = arith.constant 0 : index
    %4 = vector.load %arg4[%c0_2, %c0_3, %c0_4] : memref<1x4x256xf32, #tpu.memory_space<vmem>>, vector<1x4x256xf32>
    %5 = vector.shape_cast %4 : vector<1x4x256xf32> to vector<4x256xf32>
    %6 = vector.shape_cast %3 : vector<4x256xf32> to vector<1x4x256xf32>
    tpu.vector_store %arg4[%c0_2, %c0_3, %c0_4], %6 {strides = array<i32>} : memref<1x4x256xf32, #tpu.memory_space<vmem>>, vector<1x4x256xf32>,
    return
  }
  func.func @transform_0(%arg0: i32, %arg1: i32) -> (i32, i32) {
    %c0_i32 = arith.constant 0 : i32
    %c0_i32_0 = arith.constant 0 : i32
    return %arg0, %c0_i32 : i32, i32
  }
  func.func @transform_1(%arg0: i32, %arg1: i32) -> (i32, i32) {
    %c0_i32 = arith.constant 0 : i32
    %c0_i32_0 = arith.constant 0 : i32
    %c0_i32_1 = arith.constant 0 : i32
    return %c0_i32, %c0_i32_0 : i32, i32
  }
  func.func @transform_2(%arg0: i32, %arg1: i32) -> (i32, i32, i32) {
    %c0_i32 = arith.constant 0 : i32
    %c0_i32_0 = arith.constant 0 : i32
    return %arg1, %arg0, %c0_i32 : i32, i32, i32
  }
}

</mosaic_0001>

<llo_original>
// kernel: tpu_custom_call.1
$region0: #{tpu_custom_call.1}
  #allocation0 [shape = 'u32[]', space=smem, size = 0x4, offset = 0x4, fixed_abs, tag = 'smem constant byte address 0x4 - core index']
  #allocation1 [shape = 'u32[144,128]{1,0:T(1,128)}', space=vmem, size = 0x12000, scoped, tag = 'internal scratch']
  #allocation2 [shape = 'f32[4,256]{1,0:T(4,128)}', space=vmem, size = 0x1000, scoped, tag = 'scratch operand']
  %s0 = inlined_call_operand.hbm [shape: f32[4,64], index: 0, kind: input, shape index: {}]
  %s1 = inlined_call_operand.hbm [shape: f32[64,256], index: 1, kind: input, shape index: {}]
  %s2 = inlined_call_operand.hbm [shape: f32[2,4,256], index: 2, kind: output, shape index: {}]
  %s3 = sld [smem:[#allocation0]]
  $region53: #{tpu_custom_call.1} parent=0
    _
  %s5 = ssub.s32 1, %s3
  %s6 = scalar_select 0, %s5, %s3
  $region1: #{tpu_custom_call.1} parent=0
    #allocation3 [shape = 'u8[2048]{0}', space=vmem, size = 0x800, scoped, tag = 'input window, operand 0, single buffered']
    #allocation4 [shape = 's32[2]{0}', space=sflag, size = 0x8, scoped, tag = 'scoped memory for tpu_custom_call.1']
    #allocation5 [shape = 's32[2]{0}', space=sflag, size = 0x8, scoped, tag = 'scoped memory for tpu_custom_call.1']
    #allocation6 [shape = 'u8[65536]{0}', space=vmem, size = 0x10000, scoped, tag = 'input window, operand 1, single buffered']
    #allocation7 [shape = 's32[1]{0}', space=sflag, size = 0x4, scoped, tag = 'scoped memory for tpu_custom_call.1']
    #allocation8 [shape = 'u8[8192]{0}', space=vmem, size = 0x2000, scoped, tag = 'output window, operand 0']
    %7 = vsyncpa [#allocation4], 0
    %8 = vsyncpa [#allocation7], 0
    %9 = vsyncpa [#allocation5], 0
    %s10 = scalar_lea.sflag [#allocation5], 1
    %11 = vsyncpa %s10, 0
    loop: start=0, step=1, limit=4
    $region2: #{tpu_custom_call.1} parent=1 // loop_pre_header
      _
    $region3: #{tpu_custom_call.1} parent=1 // loop_header
      %s13 = sphi 0, %s17
      %p14 = scmp.ge.s32.totalorder %s13, 4
      %s20 = sphi 0, %s32
      %s21 = sphi 0, %s28
      %s22 = sphi 0, %s20
      %s23 = sphi 0, %s21
      %s24 = sphi 0, %s22
      %s25 = sphi 0, %s23
      %s35 = sphi 0, %s37
      %s38 = sphi 0, %s35
      %s39 = sphi 0, %s38
      %s55 = sphi 0, %s39
      %s59 = sphi 0, %s59
      %s61 = sphi 0, %s59
      %s62 = sphi 0, %s61
      %s76 = sphi 0, %s62
      %s84 = sphi 0, %s86
      %s87 = sphi 0, %s84
      %s88 = sphi 0, %s87
      %s104 = sphi 0, %s88
    $region4: #{tpu_custom_call.1} parent=1 // loop_header_branch
      %16 = sbr.rel (%p14) target = $region8
    $region5: #{tpu_custom_call.1} parent=1 // loop_body
      %s18 = ssub.s32 %s13, 1
      %s19 = ssub.s32 %s13, 2
      %s26 = sadd.s32 1, %s21
      %p27 = scmp.ge.s32.totalorder %s26, 2
      %s28 = scalar_select %p27, 0, %s26
      %s29 = sadd.s32 1, %s20
      %s30 = scalar_select %p27, %s29, %s20
      %p31 = scmp.ge.s32.totalorder %s30, 1
      %s32 = scalar_select %p31, 0, %s30
      %s33 = ssub.s32 %s20, %s32
      %p34 = scmp.eq.s32.totalorder %s33, 0
      %s36 = sadd.s32 %s35, 1
      %s37 = scalar_select %p34, %s35, %s36
      %p40 = pneg %p34
      %p41 = scmp.eq.s32.totalorder %s13, 1
      %p42 = por %p40, %p41
      %p43 = scmp.ne.s32.totalorder %s35, %s38
      %p44 = scmp.eq.s32.totalorder %s13, 0
      %p45 = por %p43, %p44
      %p46 = scmp.ne.s32.totalorder %s35, %s38
      %p47 = scmp.eq.s32.totalorder %s18, 1
      %p48 = por %p46, %p47
      %p49 = scmp.ne.s32.totalorder %s38, %s39
      %p50 = scmp.eq.s32.totalorder %s18, 0
      %p51 = por %p49, %p50
      %p52 = scmp.ne.s32.totalorder %s38, %s39
      %p53 = scmp.eq.s32.totalorder %s19, 1
      %p54 = por %p52, %p53
      %p56 = scmp.ne.s32.totalorder %s39, %s55
      %p57 = scmp.eq.s32.totalorder %s19, 0
      %p58 = por %p56, %p57
      %s60 = sadd.s32 %s59, 1
      %p63 = scmp.eq.s32.totalorder %s13, 1
      %p64 = scmp.ne.s32.totalorder %s59, %s61
      %p65 = scmp.eq.s32.totalorder %s13, 0
      %p66 = por %p64, %p65
      %p67 = scmp.ne.s32.totalorder %s59, %s61
      %p68 = scmp.eq.s32.totalorder %s18, 1
      %p69 = por %p67, %p68
      %p70 = scmp.ne.s32.totalorder %s61, %s62
      %p71 = scmp.eq.s32.totalorder %s18, 0
      %p72 = por %p70, %p71
      %p73 = scmp.ne.s32.totalorder %s61, %s62
      %p74 = scmp.eq.s32.totalorder %s19, 1
      %p75 = por %p73, %p74
      %p77 = scmp.ne.s32.totalorder %s62, %s76
      %p78 = scmp.eq.s32.totalorder %s19, 0
      %p79 = por %p77, %p78
      %s80 = ssub.s32 %s21, %s28
      %s81 = ssub.s32 %s20, %s32
      %s82 = sor.u32 %s80, %s81
      %p83 = scmp.eq.s32.totalorder %s82, 0
      %s85 = sadd.s32 %s84, 1
      %s86 = scalar_select %p83, %s84, %s85
      %p89 = pneg %p83
      %p90 = scmp.eq.s32.totalorder %s13, 1
      %p91 = por %p89, %p90
      %p92 = scmp.ne.s32.totalorder %s84, %s87
      %p93 = scmp.eq.s32.totalorder %s13, 0
      %p94 = por %p92, %p93
      %p95 = scmp.ne.s32.totalorder %s84, %s87
      %p96 = scmp.eq.s32.totalorder %s18, 1
      %p97 = por %p95, %p96
      %p98 = scmp.ne.s32.totalorder %s87, %s88
      %p99 = scmp.eq.s32.totalorder %s18, 0
      %p100 = por %p98, %p99
      %p101 = scmp.ne.s32.totalorder %s87, %s88
      %p102 = scmp.eq.s32.totalorder %s19, 1
      %p103 = por %p101, %p102
      %p105 = scmp.ne.s32.totalorder %s88, %s104
      %p106 = scmp.eq.s32.totalorder %s19, 0
      %p107 = por %p105, %p106
      %p108 = scmp.le.s32.totalorder 1, %s13
      %p109 = scmp.lt.s32.totalorder %s13, 3
      %p110 = pnand %p108, %p109
      %p111 = pneg %p110
      // Predicated region
      $region9: #{tpu_custom_call.1} parent=5 // pred_check
        _
      $region10: #{tpu_custom_call.1} parent=5 // pred_check_branch
        %113 = sbr.rel (%p110) target = $region12
      $region11: #{tpu_custom_call.1} parent=5 // pred_region
        %s114 = ssub.s32 %s13, 1
        // Predicated region
        $region13: #{tpu_custom_call.1} parent=11 // pred_check
          %p115 = pneg %p51
        $region14: #{tpu_custom_call.1} parent=11 // pred_check_branch
          %117 = sbr.rel (%p115) target = $region16
        $region15: #{tpu_custom_call.1} parent=11 // pred_region
          %s119 = ssub.s32 64, 64
          %120 = vsyncadd [#allocation4], %s119
          %s121 = smul.addr %s22, 64
          %s122 = scalar_lea.hbm %s0, %s121
          %s124 = sshll.u32 [#allocation3], 4
          %s125 = int_to_ptr.vmem [resolvable:$true] %s124
          %127 = dma.hbm_to_vmem [thread:$0]  %s122, 64, %s125, [#allocation4]
        $region16: #{tpu_custom_call.1} parent=11 // pred_fallthru
          _
        // Predicated region
        $region17: #{tpu_custom_call.1} parent=11 // pred_check
          %p128 = pneg %p72
        $region18: #{tpu_custom_call.1} parent=11 // pred_check_branch
          %130 = sbr.rel (%p128) target = $region20
        $region19: #{tpu_custom_call.1} parent=11 // pred_region
          %s132 = ssub.s32 2048, 2048
          %133 = vsyncadd [#allocation7], %s132
          %s134 = sshll.u32 [#allocation6], 4
          %s135 = int_to_ptr.vmem [resolvable:$true] %s134
          %140 = dma.hbm_to_vmem [thread:$0]  %s1, 2048, %s135, [#allocation7], 256, 256, 16
        $region20: #{tpu_custom_call.1} parent=11 // pred_fallthru
          _
      $region12: #{tpu_custom_call.1} parent=5 // pred_fallthru
        _
      %p141 = scmp.lt.s32.totalorder %s13, 2
      // Predicated region
      $region21: #{tpu_custom_call.1} parent=5 // pred_check
        %p142 = pneg %p141
      $region22: #{tpu_custom_call.1} parent=5 // pred_check_branch
        %144 = sbr.rel (%p142) target = $region24
      $region23: #{tpu_custom_call.1} parent=5 // pred_region
        _
      $region24: #{tpu_custom_call.1} parent=5 // pred_fallthru
        _
      %p145 = scmp.le.s32.totalorder 1, %s13
      %p146 = scmp.lt.s32.totalorder %s13, 3
      %p147 = pnand %p145, %p146
      %p148 = pneg %p147
      // Predicated region
      $region25: #{tpu_custom_call.1} parent=5 // pred_check
        _
      $region26: #{tpu_custom_call.1} parent=5 // pred_check_branch
        %150 = sbr.rel (%p147) target = $region28
      $region27: #{tpu_custom_call.1} parent=5 // pred_region
        %s151 = ssub.s32 %s13, 1
        // Predicated region
        $region29: #{tpu_custom_call.1} parent=27 // pred_check
          %p152 = pneg %p51
        $region30: #{tpu_custom_call.1} parent=27 // pred_check_branch
          %154 = sbr.rel (%p152) target = $region32
        $region31: #{tpu_custom_call.1} parent=27 // pred_region
          %155 = dma.done [#allocation4], 64
        $region32: #{tpu_custom_call.1} parent=27 // pred_fallthru
          _
        // Predicated region
        $region33: #{tpu_custom_call.1} parent=27 // pred_check
          %p156 = pneg %p72
        $region34: #{tpu_custom_call.1} parent=27 // pred_check_branch
          %158 = sbr.rel (%p156) target = $region36
        $region35: #{tpu_custom_call.1} parent=27 // pred_region
          %159 = dma.done [#allocation7], 2048
        $region36: #{tpu_custom_call.1} parent=27 // pred_fallthru
          _
        %p160 = pneg %p51
        %p161 = pneg %p48
        %p162 = pneg %p72
        %p163 = pneg %p69
        %p164 = pneg %p100
        %p165 = pneg %p97
        %s166 = sand.u32 %s87, 1
        %s167 = scalar_lea.sflag [#allocation5], %s166
        %s168 = sand.u32 %s87, 1
        %s169 = smul.addr %s168, 8
        %s170 = scalar_lea.vmem [#allocation8], %s169
        %p171 = scmp.eq.s32.totalorder %s23, 0
        // Predicated region
        $region37: #{tpu_custom_call.1} parent=27 // pred_check
          %p172 = pneg %p171
        $region38: #{tpu_custom_call.1} parent=27 // pred_check_branch
          %174 = sbr.rel (%p172) target = $region40
        $region39: #{tpu_custom_call.1} parent=27 // pred_region
          %v175 = vld [vmem:[#allocation3] sm:$0xf]
          %v176 = vld [vmem:[#allocation6] sm:$0xff]
          %v177 = vld [vmem:[#allocation6 + $0x8] sm:$0xff]
          %v178 = vld [vmem:[#allocation6 + $0x10] sm:$0xff]
          %v179 = vld [vmem:[#allocation6 + $0x18] sm:$0xff]
          %v180 = vld [vmem:[#allocation6 + $0x20] sm:$0xff]
          %v181 = vld [vmem:[#allocation6 + $0x28] sm:$0xff]
          %v182 = vld [vmem:[#allocation6 + $0x30] sm:$0xff]
          %v183 = vld [vmem:[#allocation6 + $0x38] sm:$0xff]
          %v184 = vld [vmem:[#allocation6 + $0x40] sm:$0xff]
          %v185 = vld [vmem:[#allocation6 + $0x48] sm:$0xff]
          %v186 = vld [vmem:[#allocation6 + $0x50] sm:$0xff]
          %v187 = vld [vmem:[#allocation6 + $0x58] sm:$0xff]
          %v188 = vld [vmem:[#allocation6 + $0x60] sm:$0xff]
          %v189 = vld [vmem:[#allocation6 + $0x68] sm:$0xff]
          %v190 = vld [vmem:[#allocation6 + $0x70] sm:$0xff]
          %v191 = vld [vmem:[#allocation6 + $0x78] sm:$0xff]
          %vm192 = vcmask 523264
          %v194 = vsel %vm192, %v175, 0
          %196 = vmatprep.subr.mxu0 %v177
          %197 = vmatpush1.msra.mxu0 %v176
          %198 = vmatprep.subr.mxu0 %v179
          %199 = vmatpush1.msra.mxu0 %v178
          %200 = vmatprep.subr.mxu0 %v181
          %201 = vmatpush1.msra.mxu0 %v180
          %202 = vmatprep.subr.mxu0 %v183
          %203 = vmatpush1.msra.mxu0 %v182
          %204 = vmatprep.subr.mxu0 %v185
          %205 = vmatpush1.msra.mxu0 %v184
          %206 = vmatprep.subr.mxu0 %v187
          %207 = vmatpush1.msra.mxu0 %v186
          %208 = vmatprep.subr.mxu0 %v189
          %209 = vmatpush1.msra.mxu0 %v188
          %210 = vmatprep.subr.mxu0 %v191
          %211 = vmatpush1.msra.mxu0 %v190
          %212 = vmatprep.subr.mxu0 0.0
          %213 = vmatpush1.msra.mxu0 0.0
          %214 = vmatprep.subr.mxu0 0.0
          %215 = vmatpush1.msra.mxu0 0.0
          %216 = vmatprep.subr.mxu0 0.0
          %217 = vmatpush1.msra.mxu0 0.0
          %218 = vmatprep.subr.mxu0 0.0
          %219 = vmatpush1.msra.mxu0 0.0
          %220 = vmatprep.subr.mxu0 0.0
          %221 = vmatpush1.msra.mxu0 0.0
          %222 = vmatprep.subr.mxu0 0.0
          %223 = vmatpush1.msra.mxu0 0.0
          %224 = vmatprep.subr.mxu0 0.0
          %225 = vmatpush1.msra.mxu0 0.0
          %226 = vmatprep.subr.mxu0 0.0
          %227 = vmatpush1.msra.mxu0 0.0
          %228 = vmatprep.subr.mxu0 0.0
          %229 = vmatpush1.msra.mxu0 0.0
          %230 = vmatprep.subr.mxu0 0.0
          %231 = vmatpush1.msra.mxu0 0.0
          %232 = vmatprep.subr.mxu0 0.0
          %233 = vmatpush1.msra.mxu0 0.0
          %234 = vmatprep.subr.mxu0 0.0
          %235 = vmatpush1.msra.mxu0 0.0
          %236 = vmatprep.subr.mxu0 0.0
          %237 = vmatpush1.msra.mxu0 0.0
          %238 = vmatprep.subr.mxu0 0.0
          %239 = vmatpush1.msra.mxu0 0.0
          %240 = vmatprep.subr.mxu0 0.0
          %241 = vmatpush1.msra.mxu0 0.0
          %242 = vmatprep.subr.mxu0 0.0
          %243 = vmatpush1.msra.mxu0 0.0
          %244 = vmatprep.subr.mxu0 0.0
          %245 = vmatpush1.msra.mxu0 0.0
          %246 = vmatprep.subr.mxu0 0.0
          %247 = vmatpush1.msra.mxu0 0.0
          %248 = vmatprep.subr.mxu0 0.0
          %249 = vmatpush1.msra.mxu0 0.0
          %250 = vmatprep.subr.mxu0 0.0
          %251 = vmatpush1.msra.mxu0 0.0
          %252 = vmatprep.subr.mxu0 0.0
          %253 = vmatpush1.msra.mxu0 0.0
          %254 = vmatprep.subr.mxu0 0.0
          %255 = vmatpush1.msra.mxu0 0.0
          %256 = vmatprep.subr.mxu0 0.0
          %257 = vmatpush1.msra.mxu0 0.0
          %258 = vmatprep.subr.mxu0 0.0
          %259 = vmatpush1.msra.mxu0 0.0
          %260 = vmatprep.mubr.f32.mxu0 0.0
          %261 = vmatmul.mubr.f32.gmra.mrb[0].mxu0 %v194
          %v262 = vpop.f32.mrb[0].mxu0
          %v263 = vadd.f32 0.0, %v262
          %v264 = vpop.f32.mrb[0].mxu0
          %v265 = vadd.f32 0.0, %v264
          %266 = vdwg.mxu0
          %v269 = vcombine.low %v263, %v265
          %271 = vst [vmem:[#allocation2] sm:$0xff] %v269
        $region40: #{tpu_custom_call.1} parent=27 // pred_fallthru
          _
        %v272 = vld [vmem:[#allocation2] sm:$0xff]
        %273 = vst [vmem:[%s170] sm:$0xff] %v272
        %s274 = sand.u32 %s87, 1
        %s275 = scalar_lea.sflag [#allocation5], %s274
        %s276 = sand.u32 %s87, 1
        %s277 = smul.addr %s276, 8
        %s278 = scalar_lea.vmem [#allocation8], %s277
        // Predicated region
        $region41: #{tpu_custom_call.1} parent=27 // pred_check
          %p279 = pneg %p97
        $region42: #{tpu_custom_call.1} parent=27 // pred_check_branch
          %281 = sbr.rel (%p279) target = $region44
        $region43: #{tpu_custom_call.1} parent=27 // pred_region
          %s283 = ssub.s32 128, 128
          %284 = vsyncadd %s275, %s283
          %s285 = smul.addr %s22, 2
          %s286 = smul.addr %s23, 2
          %s287 = sadd.s32 %s285, %s286
          %s288 = smul.addr %s287, 64
          %s289 = scalar_lea.hbm %s2, %s288
          %s291 = sshll.u32 %s278, 4
          %s292 = int_to_ptr.vmem [resolvable:$true] %s291
          %294 = dma.vmem_to_hbm [thread:$0]  %s292, 128, %s289, %s275
        $region44: #{tpu_custom_call.1} parent=27 // pred_fallthru
          _
      $region28: #{tpu_custom_call.1} parent=5 // pred_fallthru
        _
      %p295 = scmp.le.s32.totalorder 2, %s13
      // Predicated region
      $region45: #{tpu_custom_call.1} parent=5 // pred_check
        %p296 = pneg %p295
      $region46: #{tpu_custom_call.1} parent=5 // pred_check_branch
        %298 = sbr.rel (%p296) target = $region48
      $region47: #{tpu_custom_call.1} parent=5 // pred_region
        %s299 = ssub.s32 %s13, 2
        // Predicated region
        $region49: #{tpu_custom_call.1} parent=47 // pred_check
          %p300 = pneg %p103
        $region50: #{tpu_custom_call.1} parent=47 // pred_check_branch
          %302 = sbr.rel (%p300) target = $region52
        $region51: #{tpu_custom_call.1} parent=47 // pred_region
          %s303 = sand.u32 %s88, 1
          %s304 = scalar_lea.sflag [#allocation5], %s303
          %s305 = sand.u32 %s88, 1
          %s306 = smul.addr %s305, 8
          %s307 = scalar_lea.vmem [#allocation8], %s306
          %308 = dma.done %s304, 128
        $region52: #{tpu_custom_call.1} parent=47 // pred_fallthru
          _
      $region48: #{tpu_custom_call.1} parent=5 // pred_fallthru
        _
    $region6: #{tpu_custom_call.1} parent=1 // loop_footer
      %s17 = sadd.s32 1, %s13
    $region7: #{tpu_custom_call.1} parent=1 // loop_footer_branch
      %12 = sbr.rel target = $region3
    $region8: #{tpu_custom_call.1} parent=1 // loop_exit
      _
    %309 = vsyncpa [#allocation4], 1
    %s310 = scalar_lea.sflag [#allocation4], 1
    %311 = vsyncpa %s310, 1
    %312 = vsyncpa [#allocation7], 1
    %313 = vsyncpa [#allocation5], 1
    %s314 = scalar_lea.sflag [#allocation5], 1
    %315 = vsyncpa %s314, 1

</llo_original>
